<compile_context>
chip_gen: v5e
topology: v5e:2x2
jax: 0.10.0
libtpu: 0.0.40
codegen_flags: <defaults>
</compile_context>

<pallas_src>
import math
from functools import partial

import jax
import jax.numpy as jnp
from jax.experimental import pallas as pl
from jax.experimental.pallas import tpu as pltpu

LRELU_SLOPE = 0.1


def get_padding(kernel_size: int, dilation: int = 1) -> int:
    return (kernel_size * dilation - dilation) // 2


def _round_up(x: int, m: int) -> int:
    return ((x + m - 1) // m) * m


def _largest_divisor_tile(total: int, candidates) -> int:
    for c in candidates:
        if total % c == 0:
            return c
    return candidates[-1]


# ----------------------------------------------------------------------------
# Kernel 1: dense conv-as-matmul (groups == 1).
#   grid = (M tiles, Cout tiles, KC tiles)   -- contraction innermost
#   x_ref : (TM, TKC)   bf16   im2col'd activations (taps folded into KC)
#   w_ref : (TKC, TN)   bf16
#   b_ref : (1, TN)     f32
#   o_ref : (TM, TN)    f32    accumulated in place across the KC axis
# ----------------------------------------------------------------------------
def _dense_matmul_kernel(x_ref, w_ref, b_ref, o_ref, *, apply_act):
    kk = pl.program_id(2)

    @pl.when(kk == 0)
    def _():
        o_ref[...] = jnp.zeros_like(o_ref)

    o_ref[...] += jnp.dot(x_ref[...], w_ref[...],
                          preferred_element_type=jnp.float32)

    @pl.when(kk == pl.num_programs(2) - 1)
    def _():
        y = o_ref[...] + b_ref[...]
        if apply_act:
            y = jnp.where(y > 0, y, LRELU_SLOPE * y)
        o_ref[...] = y


# ----------------------------------------------------------------------------
# Kernel 2: grouped conv-as-matmul (groups > 1).  Single contraction step
# (KC_pad <= 1024, true for every grouped layer of DiscriminatorS: K*ci_g=164).
#   grid = (groups/GT, M tiles)
#   x_ref : (GT, TM, KC_pad)     bf16
#   w_ref : (GT, KC_pad, co_g)   bf16
#   b_ref : (1, GT*co_g)         f32
#   o_ref : (TM, GT*co_g)        f32   lane-dense, torch group-major channels
# ----------------------------------------------------------------------------
def _grouped_matmul_kernel(x_ref, w_ref, b_ref, o_ref, *, apply_act, g_tile):
    parts = [jnp.dot(x_ref[i], w_ref[i], preferred_element_type=jnp.float32)
             for i in range(g_tile)]
    y = parts[0] if g_tile == 1 else jnp.concatenate(parts, axis=-1)
    y = y + b_ref[...]
    if apply_act:
        y = jnp.where(y > 0, y, LRELU_SLOPE * y)
    o_ref[...] = y


# ----------------------------------------------------------------------------
# Conv wrappers (channels-last): x (N, T, C_in) -> (N, T_out, C_out) f32.
# ----------------------------------------------------------------------------
def _conv1d_dense(x, w, b, *, stride, padding, apply_act):
    N, T, C_in = x.shape
    C_out, _, K = w.shape

    x_pad = jnp.pad(x.astype(jnp.bfloat16),
                    ((0, 0), (padding, padding), (0, 0)))
    T_pad = T + 2 * padding
    T_out = (T_pad - K) // stride + 1
    M = N * T_out
    KC = K * C_in

    # im2col: taps folded into the contraction axis, column order (k, c)
    taps = [x_pad[:, k:k + (T_out - 1) * stride + 1:stride] for k in range(K)]
    x_col = jnp.stack(taps, axis=2).reshape(M, KC)               # (M, K*C_in)
    w_col = jnp.transpose(w, (2, 1, 0)).reshape(KC, C_out)       # (k, c) rows
    w_col = w_col.astype(jnp.bfloat16)

    KC_pad = _round_up(KC, 128)
    Co_pad = _round_up(C_out, 128)
    TKC = KC_pad if KC_pad <= 1024 else _largest_divisor_tile(
        KC_pad, (1024, 512, 256, 128))
    TN = Co_pad if Co_pad <= 512 else _largest_divisor_tile(
        Co_pad, (512, 256, 128))
    TM = min(512, _round_up(M, 8))
    M_pad = _round_up(M, TM)

    x_col = jnp.pad(x_col, ((0, M_pad - M), (0, KC_pad - KC)))
    w_col = jnp.pad(w_col, ((0, KC_pad - KC), (0, Co_pad - C_out)))
    b_pad = jnp.pad(b.reshape(1, C_out).astype(jnp.float32),
                    ((0, 0), (0, Co_pad - C_out)))

    out = pl.pallas_call(
        partial(_dense_matmul_kernel, apply_act=apply_act),
        out_shape=jax.ShapeDtypeStruct((M_pad, Co_pad), jnp.float32),
        grid_spec=pltpu.PrefetchScalarGridSpec(
            num_scalar_prefetch=0,
            grid=(M_pad // TM, Co_pad // TN, KC_pad // TKC),
            in_specs=[
                pl.BlockSpec((TM, TKC), lambda mi, ni, ki: (mi, ki)),
                pl.BlockSpec((TKC, TN), lambda mi, ni, ki: (ki, ni)),
                pl.BlockSpec((1, TN), lambda mi, ni, ki: (0, ni)),
            ],
            out_specs=pl.BlockSpec((TM, TN), lambda mi, ni, ki: (mi, ni)),
        ),
        compiler_params=pltpu.CompilerParams(
            dimension_semantics=("parallel", "parallel", "arbitrary")),
    )(x_col, w_col, b_pad)

    return out[:M, :C_out].reshape(N, T_out, C_out)


def _pick_group_tile(g, co_g, c_out):
    best = 1
    for cand in range(1, g + 1):
        if g % cand == 0 and cand * co_g <= 128:
            best = cand
    width = best * co_g
    assert width % 128 == 0 or width == c_out, (
        "unsupported grouped-conv geometry for lane-dense output tiling")
    return best


def _conv1d_grouped(x, w, b, *, stride, padding, groups, apply_act):
    N, T, C_in = x.shape
    C_out, ci_g, K = w.shape
    g = groups
    co_g = C_out // g

    x_pad = jnp.pad(x.astype(jnp.bfloat16),
                    ((0, 0), (padding, padding), (0, 0)))
    T_pad = T + 2 * padding
    T_out = (T_pad - K) // stride + 1
    M = N * T_out
    KC = K * ci_g
    KC_pad = _round_up(KC, 128)
    assert KC_pad <= 1024, "grouped contraction too large for single-step kernel"

    # group-major im2col: x_col[gr, n*T_out+t, k*ci_g+c] = x_pad[n, t*s+k, gr*ci_g+c]
    xg = x_pad.reshape(N, T_pad, g, ci_g)
    taps = [xg[:, k:k + (T_out - 1) * stride + 1:stride] for k in range(K)]
    xt = jnp.stack(taps, axis=2)                         # (N, T_out, K, g, ci_g)
    x_col = jnp.transpose(xt, (3, 0, 1, 2, 4)).reshape(g, M, KC)

    # weights: (C_out, ci_g, K) -> (g, K*ci_g, co_g) with matching (k, ci) order
    wg = w.reshape(g, co_g, ci_g, K)
    w_col = jnp.transpose(wg, (0, 3, 2, 1)).reshape(g, KC, co_g)
    w_col = w_col.astype(jnp.bfloat16)
    b2 = b.reshape(1, C_out).astype(jnp.float32)         # torch group-major order

    GT = _pick_group_tile(g, co_g, C_out)
    # keep the double-buffered (GT, TM, KC_pad) bf16 activation block <= ~4 MiB
    tm_cap = max(8, ((4 * 1024 * 1024) // (GT * KC_pad * 2)) // 8 * 8)
    TM = min(256, tm_cap, _round_up(M, 8))
    M_pad = _round_up(M, TM)

    x_col = jnp.pad(x_col, ((0, 0), (0, M_pad - M), (0, KC_pad - KC)))
    w_col = jnp.pad(w_col, ((0, 0), (0, KC_pad - KC), (0, 0)))

    out = pl.pallas_call(
        partial(_grouped_matmul_kernel, apply_act=apply_act, g_tile=GT),
        out_shape=jax.ShapeDtypeStruct((M_pad, C_out), jnp.float32),
        grid_spec=pltpu.PrefetchScalarGridSpec(
            num_scalar_prefetch=0,
            grid=(g // GT, M_pad // TM),
            in_specs=[
                pl.BlockSpec((GT, TM, KC_pad), lambda gi, mi: (gi, mi, 0)),
                pl.BlockSpec((GT, KC_pad, co_g), lambda gi, mi: (gi, 0, 0)),
                pl.BlockSpec((1, GT * co_g), lambda gi, mi: (0, gi)),
            ],
            out_specs=pl.BlockSpec((TM, GT * co_g), lambda gi, mi: (mi, gi)),
        ),
        compiler_params=pltpu.CompilerParams(
            dimension_semantics=("parallel", "parallel")),
    )(x_col, w_col, b2)

    return out[:M, :].reshape(N, T_out, C_out)


@partial(jax.jit, static_argnames=("stride", "padding", "groups", "apply_act"))
def conv1d_forward(x, w, b, *, stride, padding, groups, apply_act):
    """Grouped 1-D convolution, channels-last.

    x: (N, T, C_in) f32; w: (C_out, C_in//groups, K) torch layout; b: (C_out,).
    Returns (N, T_out, C_out) f32, with optional fused leaky_relu.
    """
    if groups == 1:
        return _conv1d_dense(x, w, b, stride=stride, padding=padding,
                             apply_act=apply_act)
    return _conv1d_grouped(x, w, b, stride=stride, padding=padding,
                           groups=groups, apply_act=apply_act)


# ----------------------------------------------------------------------------
# Parameter construction (deterministic, synthetic).
# weight_norm / spectral_norm are identity reparameterizations at init time,
# so they are folded into the raw weights.
# ----------------------------------------------------------------------------
def _init_conv(key, c_in, c_out, k, groups=1):
    kw, kb = jax.random.split(key)
    fan_in = (c_in // groups) * k
    w = jax.random.normal(kw, (c_out, c_in // groups, k), jnp.float32)
    w = w / math.sqrt(fan_in)
    b = jax.random.normal(kb, (c_out,), jnp.float32) * 0.01
    return w, b


_S_SPECS = [
    # (c_in, c_out, kernel, stride, pad, groups)
    (1, 16, 15, 1, 7, 1),
    (16, 64, 41, 4, 20, 4),
    (64, 256, 41, 4, 20, 16),
    (256, 1024, 41, 4, 20, 64),
    (1024, 1024, 41, 4, 20, 256),
    (1024, 1024, 5, 1, 2, 1),
]
_S_POST = (1024, 1, 3, 1, 1, 1)


def init_disc_s(key):
    keys = jax.random.split(key, len(_S_SPECS) + 1)
    convs = []
    for kk, (ci, co, k, s, p, g) in zip(keys[:-1], _S_SPECS):
        w, b = _init_conv(kk, ci, co, k, g)
        convs.append(dict(w=w, b=b, stride=s, pad=p, groups=g))
    ci, co, k, s, p, g = _S_POST
    w, b = _init_conv(keys[-1], ci, co, k, g)
    return dict(convs=convs, post=dict(w=w, b=b, stride=s, pad=p, groups=g))


def _p_specs(kernel_size=5, stride=3):
    pad = get_padding(kernel_size, 1)
    chans = [(1, 32), (32, 128), (128, 512), (512, 1024)]
    specs = [(ci, co, kernel_size, stride, pad, 1) for ci, co in chans]
    specs.append((1024, 1024, kernel_size, 1, pad, 1))
    return specs, (1024, 1, 3, 1, 1, 1)


def init_disc_p(key, period):
    specs, post_spec = _p_specs()
    keys = jax.random.split(key, len(specs) + 1)
    convs = []
    for kk, (ci, co, k, s, p, g) in zip(keys[:-1], specs):
        w, b = _init_conv(kk, ci, co, k, g)
        convs.append(dict(w=w, b=b, stride=s, pad=p, groups=g))
    ci, co, k, s, p, g = post_spec
    w, b = _init_conv(keys[-1], ci, co, k, g)
    return dict(period=period, convs=convs,
                post=dict(w=w, b=b, stride=s, pad=p, groups=g))


# ----------------------------------------------------------------------------
# Forward passes (matching PyTorch semantics / output shapes).
# ----------------------------------------------------------------------------
def forward_disc_s(params, x):
    # x: (N, 1, T)  (PyTorch NCW)
    N = x.shape[0]
    h = jnp.transpose(x, (0, 2, 1))                      # channels-last
    fmap = []
    for layer in params["convs"]:
        h = conv1d_forward(h, layer["w"], layer["b"], stride=layer["stride"],
                           padding=layer["pad"], groups=layer["groups"],
                           apply_act=True)
        fmap.append(jnp.transpose(h, (0, 2, 1)))         # torch NCW fmap
    p = params["post"]
    h = conv1d_forward(h, p["w"], p["b"], stride=p["stride"],
                       padding=p["pad"], groups=p["groups"], apply_act=False)
    fmap.append(jnp.transpose(h, (0, 2, 1)))
    out = jnp.transpose(h, (0, 2, 1)).reshape(N, -1)     # torch.flatten(x,1,-1)
    return out, fmap


def forward_disc_p(params, x):
    period = params["period"]
    N, C, T = x.shape
    if T % period != 0:
        n_pad = period - T % period
        x = jnp.pad(x, ((0, 0), (0, 0), (0, n_pad)), mode="reflect")
        T = T + n_pad
    rows = T // period
    x4 = x.reshape(N, C, rows, period)
    # fold (batch, period-column) into rows; Conv2d with (K,1) == 1D conv/col
    h = jnp.transpose(x4, (0, 3, 2, 1)).reshape(N * period, rows, C)
    fmap = []
    for layer in params["convs"]:
        h = conv1d_forward(h, layer["w"], layer["b"], stride=layer["stride"],
                           padding=layer["pad"], groups=layer["groups"],
                           apply_act=True)
        t_l, c_l = h.shape[1], h.shape[2]
        fmap.append(jnp.transpose(h.reshape(N, period, t_l, c_l), (0, 3, 2, 1)))
    p = params["post"]
    h = conv1d_forward(h, p["w"], p["b"], stride=p["stride"],
                       padding=p["pad"], groups=p["groups"], apply_act=False)
    t_l, c_l = h.shape[1], h.shape[2]
    h_nchw = jnp.transpose(h.reshape(N, period, t_l, c_l), (0, 3, 2, 1))
    fmap.append(h_nchw)                                  # (N, 1, T_out, period)
    out = h_nchw.reshape(N, -1)
    return out, fmap


def init_mpd(key):
    periods = [2, 3, 5, 7, 11]
    keys = jax.random.split(key, len(periods) + 1)
    discs = [("s", init_disc_s(keys[0]))]
    for kk, p in zip(keys[1:], periods):
        discs.append(("p", init_disc_p(kk, p)))
    return discs


def multi_period_discriminator(discs, y, y_hat):
    # Batch y and y_hat into one forward per discriminator so each layer's
    # weights are streamed from HBM once for both inputs.
    B = y.shape[0]
    x = jnp.concatenate([y, y_hat], axis=0)              # (2B, 1, T)
    y_d_rs, y_d_gs, fmap_rs, fmap_gs = [], [], [], []
    for kind, params in discs:
        fwd = forward_disc_s if kind == "s" else forward_disc_p
        out, fmap = fwd(params, x)
        y_d_rs.append(out[:B])
        y_d_gs.append(out[B:])
        fmap_rs.append([f[:B] for f in fmap])
        fmap_gs.append([f[B:] for f in fmap])
    return y_d_rs, y_d_gs, fmap_rs, fmap_gs


def _conv_ref(xc, wc, bc, stride, pad, groups, apply_act):
    ref = jax.lax.conv_general_dilated(
        jnp.transpose(xc, (0, 2, 1)).astype(jnp.bfloat16),
        wc.astype(jnp.bfloat16),
        window_strides=(stride,), padding=[(pad, pad)],
        feature_group_count=groups,
        dimension_numbers=("NCH", "OIH", "NCH"),
        preferred_element_type=jnp.float32)
    ref = ref + bc[None, :, None]
    if apply_act:
        ref = jnp.where(ref > 0, ref, LRELU_SLOPE * ref)
    return jnp.transpose(ref, (0, 2, 1))


if __name__ == "__main__":
    key = jax.random.PRNGKey(0)
    k_param, k_y, k_g, k_chk = jax.random.split(key, 4)
    B, T = 2, 256                                        # small audio clip
    discs = init_mpd(k_param)
    y = jax.random.normal(k_y, (B, 1, T), jnp.float32)
    y_hat = jax.random.normal(k_g, (B, 1, T), jnp.float32)

    # --- numerical check: grouped path vs lax.conv ---------------------------
    ck, cw, cb, dk, dw, db = jax.random.split(k_chk, 6)
    Nc, Tc, Ci, Co, Kc, Sc, Pc, Gc = 3, 32, 8, 16, 5, 2, 2, 4
    xc = jax.random.normal(ck, (Nc, Tc, Ci), jnp.float32)
    wc = jax.random.normal(cw, (Co, Ci // Gc, Kc), jnp.float32) * 0.2
    bc = jax.random.normal(cb, (Co,), jnp.float32) * 0.1
    got = conv1d_forward(xc, wc, bc, stride=Sc, padding=Pc, groups=Gc,
                         apply_act=True)
    ref = _conv_ref(xc, wc, bc, Sc, Pc, Gc, True)
    assert jnp.allclose(got, ref, atol=5e-2, rtol=5e-2), \
        float(jnp.max(jnp.abs(got - ref)))

    # --- numerical check: dense path vs lax.conv ------------------------------
    Nd, Td, Cid, Cod, Kd, Sd, Pd = 2, 24, 6, 10, 5, 2, 2
    xd = jax.random.normal(dk, (Nd, Td, Cid), jnp.float32)
    wd = jax.random.normal(dw, (Cod, Cid, Kd), jnp.float32) * 0.2
    bd = jax.random.normal(db, (Cod,), jnp.float32) * 0.1
    got_d = conv1d_forward(xd, wd, bd, stride=Sd, padding=Pd, groups=1,
                           apply_act=True)
    ref_d = _conv_ref(xd, wd, bd, Sd, Pd, 1, True)
    assert jnp.allclose(got_d, ref_d, atol=5e-2, rtol=5e-2), \
        float(jnp.max(jnp.abs(got_d - ref_d)))

    # --- full multi-period discriminator --------------------------------------
    out = multi_period_discriminator(discs, y, y_hat)
    jax.block_until_ready(out)

    # sanity checks on output structure (DiscS: 6 convs + post = 7 fmaps;
    # each DiscP: 5 convs + post = 6 fmaps)
    y_d_rs, y_d_gs, fmap_rs, fmap_gs = out
    assert len(y_d_rs) == 6 and len(y_d_gs) == 6
    assert len(fmap_rs) == 6 and len(fmap_gs) == 6
    assert len(fmap_rs[0]) == 7 and len(fmap_gs[0]) == 7
    assert all(len(f) == 6 for f in fmap_rs[1:])
    assert all(len(f) == 6 for f in fmap_gs[1:])
    assert all(r.shape == g_.shape for r, g_ in zip(y_d_rs, y_d_gs))
    assert fmap_rs[0][0].shape == (B, 16, T)             # DiscS layer-1 fmap, NCW
    print("KERNEL_OK")
</pallas_src>

<mosaic_0001>
module attributes {stable_mosaic.version = 11 : i64} {
  func.func @_grouped_matmul_kernel(%arg0: i32, %arg1: i32, %arg2: memref<4x48x128xbf16, #tpu.memory_space<vmem>>, %arg3: memref<4x128x4xbf16, #tpu.memory_space<vmem>>, %arg4: memref<1x16xf32, #tpu.memory_space<vmem>>, %arg5: memref<48x16xf32, #tpu.memory_space<vmem>>) attributes {dimension_semantics = [#tpu.dimension_semantics<parallel>, #tpu.dimension_semantics<parallel>], iteration_bounds = array<i64: 1, 1>, scalar_prefetch = 0 : i64, scratch_operands = 0 : i64, tpu.core_type = #tpu.core_type<tc>, window_params = [{transform_indices = @transform_0, window_bounds = array<i64: 4, 48, 128>}, {transform_indices = @transform_1, window_bounds = array<i64: 4, 128, 4>}, {transform_indices = @transform_2, window_bounds = array<i64: 1, 16>}, {transform_indices = @transform_3, window_bounds = array<i64: 48, 16>}]} {
    %c0 = arith.constant 0 : index
    %c0_0 = arith.constant 0 : index
    %c0_1 = arith.constant 0 : index
    %0 = vector.load %arg2[%c0, %c0_0, %c0_1] : memref<4x48x128xbf16, #tpu.memory_space<vmem>>, vector<1x48x128xbf16>
    %1 = vector.shape_cast %0 : vector<1x48x128xbf16> to vector<48x128xbf16>
    %c0_2 = arith.constant 0 : index
    %c0_3 = arith.constant 0 : index
    %c0_4 = arith.constant 0 : index
    %2 = vector.load %arg3[%c0_2, %c0_3, %c0_4] : memref<4x128x4xbf16, #tpu.memory_space<vmem>>, vector<1x128x4xbf16>
    %3 = vector.shape_cast %2 : vector<1x128x4xbf16> to vector<128x4xbf16>
    %cst = arith.constant dense<0.000000e+00> : vector<48x4xf32>
    %4 = tpu.matmul %1, %3, %cst {dimension_numbers = #tpu.dot_dimension_numbers<[1], [0], [0], [1], [0, 0, 1, 1], [], []>} : vector<48x128xbf16>, vector<128x4xbf16>, vector<48x4xf32> -> vector<48x4xf32>
    %c1 = arith.constant 1 : index
    %c0_5 = arith.constant 0 : index
    %c0_6 = arith.constant 0 : index
    %5 = vector.load %arg2[%c1, %c0_5, %c0_6] : memref<4x48x128xbf16, #tpu.memory_space<vmem>>, vector<1x48x128xbf16>
    %6 = vector.shape_cast %5 : vector<1x48x128xbf16> to vector<48x128xbf16>
    %c1_7 = arith.constant 1 : index
    %c0_8 = arith.constant 0 : index
    %c0_9 = arith.constant 0 : index
    %7 = vector.load %arg3[%c1_7, %c0_8, %c0_9] : memref<4x128x4xbf16, #tpu.memory_space<vmem>>, vector<1x128x4xbf16>
    %8 = vector.shape_cast %7 : vector<1x128x4xbf16> to vector<128x4xbf16>
    %cst_10 = arith.constant dense<0.000000e+00> : vector<48x4xf32>
    %9 = tpu.matmul %6, %8, %cst_10 {dimension_numbers = #tpu.dot_dimension_numbers<[1], [0], [0], [1], [0, 0, 1, 1], [], []>} : vector<48x128xbf16>, vector<128x4xbf16>, vector<48x4xf32> -> vector<48x4xf32>
    %c2 = arith.constant 2 : index
    %c0_11 = arith.constant 0 : index
    %c0_12 = arith.constant 0 : index
    %10 = vector.load %arg2[%c2, %c0_11, %c0_12] : memref<4x48x128xbf16, #tpu.memory_space<vmem>>, vector<1x48x128xbf16>
    %11 = vector.shape_cast %10 : vector<1x48x128xbf16> to vector<48x128xbf16>
    %c2_13 = arith.constant 2 : index
    %c0_14 = arith.constant 0 : index
    %c0_15 = arith.constant 0 : index
    %12 = vector.load %arg3[%c2_13, %c0_14, %c0_15] : memref<4x128x4xbf16, #tpu.memory_space<vmem>>, vector<1x128x4xbf16>
    %13 = vector.shape_cast %12 : vector<1x128x4xbf16> to vector<128x4xbf16>
    %cst_16 = arith.constant dense<0.000000e+00> : vector<48x4xf32>
    %14 = tpu.matmul %11, %13, %cst_16 {dimension_numbers = #tpu.dot_dimension_numbers<[1], [0], [0], [1], [0, 0, 1, 1], [], []>} : vector<48x128xbf16>, vector<128x4xbf16>, vector<48x4xf32> -> vector<48x4xf32>
    %c3 = arith.constant 3 : index
    %c0_17 = arith.constant 0 : index
    %c0_18 = arith.constant 0 : index
    %15 = vector.load %arg2[%c3, %c0_17, %c0_18] : memref<4x48x128xbf16, #tpu.memory_space<vmem>>, vector<1x48x128xbf16>
    %16 = vector.shape_cast %15 : vector<1x48x128xbf16> to vector<48x128xbf16>
    %c3_19 = arith.constant 3 : index
    %c0_20 = arith.constant 0 : index
    %c0_21 = arith.constant 0 : index
    %17 = vector.load %arg3[%c3_19, %c0_20, %c0_21] : memref<4x128x4xbf16, #tpu.memory_space<vmem>>, vector<1x128x4xbf16>
    %18 = vector.shape_cast %17 : vector<1x128x4xbf16> to vector<128x4xbf16>
    %cst_22 = arith.constant dense<0.000000e+00> : vector<48x4xf32>
    %19 = tpu.matmul %16, %18, %cst_22 {dimension_numbers = #tpu.dot_dimension_numbers<[1], [0], [0], [1], [0, 0, 1, 1], [], []>} : vector<48x128xbf16>, vector<128x4xbf16>, vector<48x4xf32> -> vector<48x4xf32>
    %20 = tpu.concatenate %4, %9, %14, %19 in 1 : vector<48x4xf32>, vector<48x4xf32>, vector<48x4xf32>, vector<48x4xf32> -> vector<48x16xf32>
    %c0_23 = arith.constant 0 : index
    %c0_24 = arith.constant 0 : index
    %21 = vector.load %arg4[%c0_23, %c0_24] : memref<1x16xf32, #tpu.memory_space<vmem>>, vector<1x16xf32>
    %22 = vector.broadcast %21 : vector<1x16xf32> to vector<48x16xf32>
    %23 = arith.addf %20, %22 : vector<48x16xf32>
    %cst_25 = arith.constant 0.000000e+00 : f32
    %24 = vector.broadcast %cst_25 : f32 to vector<48x16xf32>
    %25 = arith.cmpf ogt, %23, %24 : vector<48x16xf32>
    %cst_26 = arith.constant 1.000000e-01 : f32
    %26 = vector.broadcast %cst_26 : f32 to vector<48x16xf32>
    %27 = arith.mulf %26, %23 : vector<48x16xf32>
    %28 = arith.select %25, %23, %27 : vector<48x16xi1>, vector<48x16xf32>
    %c0_27 = arith.constant 0 : index
    %c0_28 = arith.constant 0 : index
    %29 = vector.load %arg5[%c0_27, %c0_28] : memref<48x16xf32, #tpu.memory_space<vmem>>, vector<48x16xf32>
    tpu.vector_store %arg5[%c0_27, %c0_28], %28 {strides = array<i32>} : memref<48x16xf32, #tpu.memory_space<vmem>>, vector<48x16xf32>,
    return
  }
  func.func @transform_0(%arg0: i32, %arg1: i32) -> (i32, i32, i32) {
    %c0_i32 = arith.constant 0 : i32
    %c0_i32_0 = arith.constant 0 : i32
    return %arg0, %arg1, %c0_i32 : i32, i32, i32
  }
  func.func @transform_1(%arg0: i32, %arg1: i32) -> (i32, i32, i32) {
    %c0_i32 = arith.constant 0 : i32
    %c0_i32_0 = arith.constant 0 : i32
    %c0_i32_1 = arith.constant 0 : i32
    return %arg0, %c0_i32, %c0_i32_0 : i32, i32, i32
  }
  func.func @transform_2(%arg0: i32, %arg1: i32) -> (i32, i32) {
    %c0_i32 = arith.constant 0 : i32
    %c0_i32_0 = arith.constant 0 : i32
    return %c0_i32, %arg0 : i32, i32
  }
  func.func @transform_3(%arg0: i32, %arg1: i32) -> (i32, i32) {
    %c0_i32 = arith.constant 0 : i32
    return %arg1, %arg0 : i32, i32
  }
}

</mosaic_0001>

<llo_original>
// kernel: conv1d_forward.1
$region0: #{conv1d_forward.1}
  #allocation0 [shape = 'u32[]', space=smem, size = 0x4, offset = 0x4, fixed_abs, tag = 'smem constant byte address 0x4 - core index']
  #allocation1 [shape = 'u32[72,128]{1,0:T(1,128)}', space=vmem, size = 0x9000, scoped, tag = 'internal scratch']
  %s0 = inlined_call_operand.vmem [shape: bf16[4,48,128], index: 0, kind: input, shape index: {}]
  %s1 = inlined_call_operand.vmem [shape: bf16[4,128,4], index: 1, kind: input, shape index: {}]
  %s2 = inlined_call_operand.vmem [shape: f32[1,16], index: 2, kind: input, shape index: {}]
  %s3 = inlined_call_operand.hbm [shape: f32[48,16], index: 3, kind: output, shape index: {}]
  %s4 = sld [smem:[#allocation0]]
  $region22: #{conv1d_forward.1} parent=0
    _
  %s6 = ssub.s32 1, %s4
  %s7 = scalar_select 0, %s6, %s4
  $region1: #{conv1d_forward.1} parent=0
    #allocation2 [shape = 'u8[24576]{0}', space=vmem, size = 0x6000, scoped, tag = 'output window, operand 0, single buffered']
    #allocation3 [shape = 's32[1]{0}', space=sflag, size = 0x4, scoped, tag = 'scoped memory for conv1d_forward.1']
    %8 = vsyncpa [#allocation3], 0
    // Predicated region
    $region2: #{conv1d_forward.1} parent=1 // pred_check
      _
    $region3: #{conv1d_forward.1} parent=1 // pred_check_branch
      %10 = sbr.rel (0) target = $region5
    $region4: #{conv1d_forward.1} parent=1 // pred_region
      _
    $region5: #{conv1d_forward.1} parent=1 // pred_fallthru
      _
    // Predicated region
    $region6: #{conv1d_forward.1} parent=1 // pred_check
      _
    $region7: #{conv1d_forward.1} parent=1 // pred_check_branch
      %12 = sbr.rel (0) target = $region9
    $region8: #{conv1d_forward.1} parent=1 // pred_region
      _
    $region9: #{conv1d_forward.1} parent=1 // pred_fallthru
      _
    // Predicated region
    $region10: #{conv1d_forward.1} parent=1 // pred_check
      _
    $region11: #{conv1d_forward.1} parent=1 // pred_check_branch
      %14 = sbr.rel (0) target = $region13
    $region12: #{conv1d_forward.1} parent=1 // pred_region
      _
    $region13: #{conv1d_forward.1} parent=1 // pred_fallthru
      _
    %v15 = vld [vmem:[%s0] sm:$0xf]
    %v16 = vld [vmem:[%s0 + $0x4] sm:$0xf]
    %v17 = vld [vmem:[%s0 + $0x8] sm:$0xf]
    %v18 = vld [vmem:[%s0 + $0xc] sm:$0xf]
    %v19 = vld [vmem:[%s0 + $0x10] sm:$0xf]
    %v20 = vld [vmem:[%s0 + $0x14] sm:$0xf]
    %v21 = vld [vmem:[%s1] sm:$0xf]
    %v22 = vld [vmem:[%s1 + $0x4] sm:$0xf]
    %v23 = vld [vmem:[%s1 + $0x8] sm:$0xf]
    %v24 = vld [vmem:[%s1 + $0xc] sm:$0xf]
    %v25 = vld [vmem:[%s1 + $0x10] sm:$0xf]
    %v26 = vld [vmem:[%s1 + $0x14] sm:$0xf]
    %v27 = vld [vmem:[%s1 + $0x18] sm:$0xf]
    %v28 = vld [vmem:[%s1 + $0x1c] sm:$0xf]
    %v29 = vld [vmem:[%s1 + $0x20] sm:$0xf]
    %v30 = vld [vmem:[%s1 + $0x24] sm:$0xf]
    %v31 = vld [vmem:[%s1 + $0x28] sm:$0xf]
    %v32 = vld [vmem:[%s1 + $0x2c] sm:$0xf]
    %v33 = vld [vmem:[%s1 + $0x30] sm:$0xf]
    %v34 = vld [vmem:[%s1 + $0x34] sm:$0xf]
    %v35 = vld [vmem:[%s1 + $0x38] sm:$0xf]
    %v36 = vld [vmem:[%s1 + $0x3c] sm:$0xf]
    %v43 = vunpack.c.l.b16 %v15
    %v44 = vunpack.c.l.b16 %v16
    %v45 = vunpack.c.l.b16 %v17
    %v46 = vunpack.c.l.b16 %v18
    %v47 = vunpack.c.l.b16 %v19
    %v48 = vunpack.c.l.b16 %v20
    %v49 = vpack.c.b16 %v44, %v43
    %v50 = vpack.c.b16 %v46, %v45
    %v51 = vpack.c.b16 %v48, %v47
    %v71 = vunpack.c.l.b16 %v21
    %v72 = vunpack.c.l.b16 %v22
    %v73 = vunpack.c.l.b16 %v23
    %v74 = vunpack.c.l.b16 %v24
    %v75 = vunpack.c.l.b16 %v25
    %v76 = vunpack.c.l.b16 %v26
    %v77 = vunpack.c.l.b16 %v27
    %v78 = vunpack.c.l.b16 %v28
    %v79 = vunpack.c.l.b16 %v29
    %v80 = vunpack.c.l.b16 %v30
    %v81 = vunpack.c.l.b16 %v31
    %v82 = vunpack.c.l.b16 %v32
    %v83 = vunpack.c.l.b16 %v33
    %v84 = vunpack.c.l.b16 %v34
    %v85 = vunpack.c.l.b16 %v35
    %v86 = vunpack.c.l.b16 %v36
    %v87 = vpack.c.b16 %v72, %v71
    %v88 = vpack.c.b16 %v74, %v73
    %v89 = vpack.c.b16 %v76, %v75
    %v90 = vpack.c.b16 %v78, %v77
    %v91 = vpack.c.b16 %v80, %v79
    %v92 = vpack.c.b16 %v82, %v81
    %v93 = vpack.c.b16 %v84, %v83
    %v94 = vpack.c.b16 %v86, %v85
    %103 = vmatpush.bf16.msra.mxu0 %v94
    %104 = vmatpush.bf16.msra.mxu0 %v93
    %105 = vmatpush.bf16.msra.mxu0 %v92
    %106 = vmatpush.bf16.msra.mxu0 %v91
    %107 = vmatpush.bf16.msra.mxu0 %v90
    %108 = vmatpush.bf16.msra.mxu0 %v89
    %109 = vmatpush.bf16.msra.mxu0 %v88
    %110 = vmatpush.bf16.msra.mxu0 %v87
    %111 = vmatmul.bf16.gmra.mxu0 %v49
    %v112 = vpop.f32.mrf.mxu0
    %v113 = vadd.f32 0.0, %v112
    %v114 = vpop.f32.mrf.mxu0
    %v115 = vadd.f32 0.0, %v114
    %116 = vmatmul.bf16.gmra.mxu0 %v50
    %v117 = vpop.f32.mrf.mxu0
    %v118 = vadd.f32 0.0, %v117
    %v119 = vpop.f32.mrf.mxu0
    %v120 = vadd.f32 0.0, %v119
    %121 = vmatmul.bf16.gmra.mxu0 %v51
    %v122 = vpop.f32.mrf.mxu0
    %v123 = vadd.f32 0.0, %v122
    %v124 = vpop.f32.mrf.mxu0
    %v125 = vadd.f32 0.0, %v124
    %126 = vdwg.mxu0
    %s127 = scalar_lea.vmem %s0, 24
    %v128 = vld [vmem:[%s127] sm:$0xf]
    %v129 = vld [vmem:[%s127 + $0x4] sm:$0xf]
    %v130 = vld [vmem:[%s127 + $0x8] sm:$0xf]
    %v131 = vld [vmem:[%s127 + $0xc] sm:$0xf]
    %v132 = vld [vmem:[%s127 + $0x10] sm:$0xf]
    %v133 = vld [vmem:[%s127 + $0x14] sm:$0xf]
    %s134 = scalar_lea.vmem %s1, 64
    %v135 = vld [vmem:[%s134] sm:$0xf]
    %v136 = vld [vmem:[%s134 + $0x4] sm:$0xf]
    %v137 = vld [vmem:[%s134 + $0x8] sm:$0xf]
    %v138 = vld [vmem:[%s134 + $0xc] sm:$0xf]
    %v139 = vld [vmem:[%s134 + $0x10] sm:$0xf]
    %v140 = vld [vmem:[%s134 + $0x14] sm:$0xf]
    %v141 = vld [vmem:[%s134 + $0x18] sm:$0xf]
    %v142 = vld [vmem:[%s134 + $0x1c] sm:$0xf]
    %v143 = vld [vmem:[%s134 + $0x20] sm:$0xf]
    %v144 = vld [vmem:[%s134 + $0x24] sm:$0xf]
    %v145 = vld [vmem:[%s134 + $0x28] sm:$0xf]
    %v146 = vld [vmem:[%s134 + $0x2c] sm:$0xf]
    %v147 = vld [vmem:[%s134 + $0x30] sm:$0xf]
    %v148 = vld [vmem:[%s134 + $0x34] sm:$0xf]
    %v149 = vld [vmem:[%s134 + $0x38] sm:$0xf]
    %v150 = vld [vmem:[%s134 + $0x3c] sm:$0xf]
    %v157 = vunpack.c.l.b16 %v128
    %v158 = vunpack.c.l.b16 %v129
    %v159 = vunpack.c.l.b16 %v130
    %v160 = vunpack.c.l.b16 %v131
    %v161 = vunpack.c.l.b16 %v132
    %v162 = vunpack.c.l.b16 %v133
    %v163 = vpack.c.b16 %v158, %v157
    %v164 = vpack.c.b16 %v160, %v159
    %v165 = vpack.c.b16 %v162, %v161
    %v185 = vunpack.c.l.b16 %v135
    %v186 = vunpack.c.l.b16 %v136
    %v187 = vunpack.c.l.b16 %v137
    %v188 = vunpack.c.l.b16 %v138
    %v189 = vunpack.c.l.b16 %v139
    %v190 = vunpack.c.l.b16 %v140
    %v191 = vunpack.c.l.b16 %v141
    %v192 = vunpack.c.l.b16 %v142
    %v193 = vunpack.c.l.b16 %v143
    %v194 = vunpack.c.l.b16 %v144
    %v195 = vunpack.c.l.b16 %v145
    %v196 = vunpack.c.l.b16 %v146
    %v197 = vunpack.c.l.b16 %v147
    %v198 = vunpack.c.l.b16 %v148
    %v199 = vunpack.c.l.b16 %v149
    %v200 = vunpack.c.l.b16 %v150
    %v201 = vpack.c.b16 %v186, %v185
    %v202 = vpack.c.b16 %v188, %v187
    %v203 = vpack.c.b16 %v190, %v189
    %v204 = vpack.c.b16 %v192, %v191
    %v205 = vpack.c.b16 %v194, %v193
    %v206 = vpack.c.b16 %v196, %v195
    %v207 = vpack.c.b16 %v198, %v197
    %v208 = vpack.c.b16 %v200, %v199
    %217 = vmatpush.bf16.msra.mxu0 %v208
    %218 = vmatpush.bf16.msra.mxu0 %v207
    %219 = vmatpush.bf16.msra.mxu0 %v206
    %220 = vmatpush.bf16.msra.mxu0 %v205
    %221 = vmatpush.bf16.msra.mxu0 %v204
    %222 = vmatpush.bf16.msra.mxu0 %v203
    %223 = vmatpush.bf16.msra.mxu0 %v202
    %224 = vmatpush.bf16.msra.mxu0 %v201
    %225 = vmatmul.bf16.gmra.mxu0 %v163
    %v226 = vpop.f32.mrf.mxu0
    %v227 = vadd.f32 0.0, %v226
    %v228 = vpop.f32.mrf.mxu0
    %v229 = vadd.f32 0.0, %v228
    %230 = vmatmul.bf16.gmra.mxu0 %v164
    %v231 = vpop.f32.mrf.mxu0
    %v232 = vadd.f32 0.0, %v231
    %v233 = vpop.f32.mrf.mxu0
    %v234 = vadd.f32 0.0, %v233
    %235 = vmatmul.bf16.gmra.mxu0 %v165
    %v236 = vpop.f32.mrf.mxu0
    %v237 = vadd.f32 0.0, %v236
    %v238 = vpop.f32.mrf.mxu0
    %v239 = vadd.f32 0.0, %v238
    %240 = vdwg.mxu0
    %s241 = scalar_lea.vmem %s0, 48
    %v242 = vld [vmem:[%s241] sm:$0xf]
    %v243 = vld [vmem:[%s241 + $0x4] sm:$0xf]
    %v244 = vld [vmem:[%s241 + $0x8] sm:$0xf]
    %v245 = vld [vmem:[%s241 + $0xc] sm:$0xf]
    %v246 = vld [vmem:[%s241 + $0x10] sm:$0xf]
    %v247 = vld [vmem:[%s241 + $0x14] sm:$0xf]
    %s248 = scalar_lea.vmem %s1, 128
    %v249 = vld [vmem:[%s248] sm:$0xf]
    %v250 = vld [vmem:[%s248 + $0x4] sm:$0xf]
    %v251 = vld [vmem:[%s248 + $0x8] sm:$0xf]
    %v252 = vld [vmem:[%s248 + $0xc] sm:$0xf]
    %v253 = vld [vmem:[%s248 + $0x10] sm:$0xf]
    %v254 = vld [vmem:[%s248 + $0x14] sm:$0xf]
    %v255 = vld [vmem:[%s248 + $0x18] sm:$0xf]
    %v256 = vld [vmem:[%s248 + $0x1c] sm:$0xf]
    %v257 = vld [vmem:[%s248 + $0x20] sm:$0xf]
    %v258 = vld [vmem:[%s248 + $0x24] sm:$0xf]
    %v259 = vld [vmem:[%s248 + $0x28] sm:$0xf]
    %v260 = vld [vmem:[%s248 + $0x2c] sm:$0xf]
    %v261 = vld [vmem:[%s248 + $0x30] sm:$0xf]
    %v262 = vld [vmem:[%s248 + $0x34] sm:$0xf]
    %v263 = vld [vmem:[%s248 + $0x38] sm:$0xf]
    %v264 = vld [vmem:[%s248 + $0x3c] sm:$0xf]
    %v271 = vunpack.c.l.b16 %v242
    %v272 = vunpack.c.l.b16 %v243
    %v273 = vunpack.c.l.b16 %v244
    %v274 = vunpack.c.l.b16 %v245
    %v275 = vunpack.c.l.b16 %v246
    %v276 = vunpack.c.l.b16 %v247
    %v277 = vpack.c.b16 %v272, %v271
    %v278 = vpack.c.b16 %v274, %v273
    %v279 = vpack.c.b16 %v276, %v275
    %v299 = vunpack.c.l.b16 %v249
    %v300 = vunpack.c.l.b16 %v250
    %v301 = vunpack.c.l.b16 %v251
    %v302 = vunpack.c.l.b16 %v252
    %v303 = vunpack.c.l.b16 %v253
    %v304 = vunpack.c.l.b16 %v254
    %v305 = vunpack.c.l.b16 %v255
    %v306 = vunpack.c.l.b16 %v256
    %v307 = vunpack.c.l.b16 %v257
    %v308 = vunpack.c.l.b16 %v258
    %v309 = vunpack.c.l.b16 %v259
    %v310 = vunpack.c.l.b16 %v260
    %v311 = vunpack.c.l.b16 %v261
    %v312 = vunpack.c.l.b16 %v262
    %v313 = vunpack.c.l.b16 %v263
    %v314 = vunpack.c.l.b16 %v264
    %v315 = vpack.c.b16 %v300, %v299
    %v316 = vpack.c.b16 %v302, %v301
    %v317 = vpack.c.b16 %v304, %v303
    %v318 = vpack.c.b16 %v306, %v305
    %v319 = vpack.c.b16 %v308, %v307
    %v320 = vpack.c.b16 %v310, %v309
    %v321 = vpack.c.b16 %v312, %v311
    %v322 = vpack.c.b16 %v314, %v313
    %331 = vmatpush.bf16.msra.mxu0 %v322
    %332 = vmatpush.bf16.msra.mxu0 %v321
    %333 = vmatpush.bf16.msra.mxu0 %v320
    %334 = vmatpush.bf16.msra.mxu0 %v319
    %335 = vmatpush.bf16.msra.mxu0 %v318
    %336 = vmatpush.bf16.msra.mxu0 %v317
    %337 = vmatpush.bf16.msra.mxu0 %v316
    %338 = vmatpush.bf16.msra.mxu0 %v315
    %339 = vmatmul.bf16.gmra.mxu0 %v277
    %v340 = vpop.f32.mrf.mxu0
    %v341 = vadd.f32 0.0, %v340
    %v342 = vpop.f32.mrf.mxu0
    %v343 = vadd.f32 0.0, %v342
    %344 = vmatmul.bf16.gmra.mxu0 %v278
    %v345 = vpop.f32.mrf.mxu0
    %v346 = vadd.f32 0.0, %v345
    %v347 = vpop.f32.mrf.mxu0
    %v348 = vadd.f32 0.0, %v347
    %349 = vmatmul.bf16.gmra.mxu0 %v279
    %v350 = vpop.f32.mrf.mxu0
    %v351 = vadd.f32 0.0, %v350
    %v352 = vpop.f32.mrf.mxu0
    %v353 = vadd.f32 0.0, %v352
    %354 = vdwg.mxu0
    %s355 = scalar_lea.vmem %s0, 72
    %v356 = vld [vmem:[%s355] sm:$0xf]
    %v357 = vld [vmem:[%s355 + $0x4] sm:$0xf]
    %v358 = vld [vmem:[%s355 + $0x8] sm:$0xf]
    %v359 = vld [vmem:[%s355 + $0xc] sm:$0xf]
    %v360 = vld [vmem:[%s355 + $0x10] sm:$0xf]
    %v361 = vld [vmem:[%s355 + $0x14] sm:$0xf]
    %s362 = scalar_lea.vmem %s1, 192
    %v363 = vld [vmem:[%s362] sm:$0xf]
    %v364 = vld [vmem:[%s362 + $0x4] sm:$0xf]
    %v365 = vld [vmem:[%s362 + $0x8] sm:$0xf]
    %v366 = vld [vmem:[%s362 + $0xc] sm:$0xf]
    %v367 = vld [vmem:[%s362 + $0x10] sm:$0xf]
    %v368 = vld [vmem:[%s362 + $0x14] sm:$0xf]
    %v369 = vld [vmem:[%s362 + $0x18] sm:$0xf]
    %v370 = vld [vmem:[%s362 + $0x1c] sm:$0xf]
    %v371 = vld [vmem:[%s362 + $0x20] sm:$0xf]
    %v372 = vld [vmem:[%s362 + $0x24] sm:$0xf]
    %v373 = vld [vmem:[%s362 + $0x28] sm:$0xf]
    %v374 = vld [vmem:[%s362 + $0x2c] sm:$0xf]
    %v375 = vld [vmem:[%s362 + $0x30] sm:$0xf]
    %v376 = vld [vmem:[%s362 + $0x34] sm:$0xf]
    %v377 = vld [vmem:[%s362 + $0x38] sm:$0xf]
    %v378 = vld [vmem:[%s362 + $0x3c] sm:$0xf]
    %v385 = vunpack.c.l.b16 %v356
    %v386 = vunpack.c.l.b16 %v357
    %v387 = vunpack.c.l.b16 %v358
    %v388 = vunpack.c.l.b16 %v359
    %v389 = vunpack.c.l.b16 %v360
    %v390 = vunpack.c.l.b16 %v361
    %v391 = vpack.c.b16 %v386, %v385
    %v392 = vpack.c.b16 %v388, %v387
    %v393 = vpack.c.b16 %v390, %v389
    %v413 = vunpack.c.l.b16 %v363
    %v414 = vunpack.c.l.b16 %v364
    %v415 = vunpack.c.l.b16 %v365
    %v416 = vunpack.c.l.b16 %v366
    %v417 = vunpack.c.l.b16 %v367
    %v418 = vunpack.c.l.b16 %v368
    %v419 = vunpack.c.l.b16 %v369
    %v420 = vunpack.c.l.b16 %v370
    %v421 = vunpack.c.l.b16 %v371
    %v422 = vunpack.c.l.b16 %v372
    %v423 = vunpack.c.l.b16 %v373
    %v424 = vunpack.c.l.b16 %v374
    %v425 = vunpack.c.l.b16 %v375
    %v426 = vunpack.c.l.b16 %v376
    %v427 = vunpack.c.l.b16 %v377
    %v428 = vunpack.c.l.b16 %v378
    %v429 = vpack.c.b16 %v414, %v413
    %v430 = vpack.c.b16 %v416, %v415
    %v431 = vpack.c.b16 %v418, %v417
    %v432 = vpack.c.b16 %v420, %v419
    %v433 = vpack.c.b16 %v422, %v421
    %v434 = vpack.c.b16 %v424, %v423
    %v435 = vpack.c.b16 %v426, %v425
    %v436 = vpack.c.b16 %v428, %v427
    %445 = vmatpush.bf16.msra.mxu0 %v436
    %446 = vmatpush.bf16.msra.mxu0 %v435
    %447 = vmatpush.bf16.msra.mxu0 %v434
    %448 = vmatpush.bf16.msra.mxu0 %v433
    %449 = vmatpush.bf16.msra.mxu0 %v432
    %450 = vmatpush.bf16.msra.mxu0 %v431
    %451 = vmatpush.bf16.msra.mxu0 %v430
    %452 = vmatpush.bf16.msra.mxu0 %v429
    %453 = vmatmul.bf16.gmra.mxu0 %v391
    %v454 = vpop.f32.mrf.mxu0
    %v455 = vadd.f32 0.0, %v454
    %v456 = vpop.f32.mrf.mxu0
    %v457 = vadd.f32 0.0, %v456
    %458 = vmatmul.bf16.gmra.mxu0 %v392
    %v459 = vpop.f32.mrf.mxu0
    %v460 = vadd.f32 0.0, %v459
    %v461 = vpop.f32.mrf.mxu0
    %v462 = vadd.f32 0.0, %v461
    %463 = vmatmul.bf16.gmra.mxu0 %v393
    %v464 = vpop.f32.mrf.mxu0
    %v465 = vadd.f32 0.0, %v464
    %v466 = vpop.f32.mrf.mxu0
    %v467 = vadd.f32 0.0, %v466
    %468 = vdwg.mxu0
    %475 = vrot.lane.b32.xlu0 %v227, 4
    %v476 = vpop.permute.xlu0 %475
    %477 = vrot.lane.b32.xlu0 %v229, 4
    %v478 = vpop.permute.xlu0 %477
    %479 = vrot.lane.b32.xlu0 %v232, 4
    %v480 = vpop.permute.xlu0 %479
    %481 = vrot.lane.b32.xlu0 %v234, 4
    %v482 = vpop.permute.xlu0 %481
    %483 = vrot.lane.b32.xlu0 %v237, 4
    %v484 = vpop.permute.xlu0 %483
    %485 = vrot.lane.b32.xlu0 %v239, 4
    %v486 = vpop.permute.xlu0 %485
    %499 = vrot.lane.b32.xlu0 %v341, 8
    %v500 = vpop.permute.xlu0 %499
    %501 = vrot.lane.b32.xlu0 %v343, 8
    %v502 = vpop.permute.xlu0 %501
    %503 = vrot.lane.b32.xlu0 %v346, 8
    %v504 = vpop.permute.xlu0 %503
    %505 = vrot.lane.b32.xlu0 %v348, 8
    %v506 = vpop.permute.xlu0 %505
    %507 = vrot.lane.b32.xlu0 %v351, 8
    %v508 = vpop.permute.xlu0 %507
    %509 = vrot.lane.b32.xlu0 %v353, 8
    %v510 = vpop.permute.xlu0 %509
    %523 = vrot.lane.b32.xlu0 %v455, 12
    %v524 = vpop.permute.xlu0 %523
    %525 = vrot.lane.b32.xlu0 %v457, 12
    %v526 = vpop.permute.xlu0 %525
    %527 = vrot.lane.b32.xlu0 %v460, 12
    %v528 = vpop.permute.xlu0 %527
    %529 = vrot.lane.b32.xlu0 %v462, 12
    %v530 = vpop.permute.xlu0 %529
    %531 = vrot.lane.b32.xlu0 %v465, 12
    %v532 = vpop.permute.xlu0 %531
    %533 = vrot.lane.b32.xlu0 %v467, 12
    %v534 = vpop.permute.xlu0 %533
    %vm541 = vcmask 31744
    %v542 = vsel %vm541, %v113, %v476
    %v543 = vsel %vm541, %v115, %v478
    %v544 = vsel %vm541, %v118, %v480
    %v545 = vsel %vm541, %v120, %v482
    %v546 = vsel %vm541, %v123, %v484
    %v547 = vsel %vm541, %v125, %v486
    %vm548 = vcmask 64512
    %v549 = vsel %vm548, %v542, %v500
    %v550 = vsel %vm548, %v543, %v502
    %v551 = vsel %vm548, %v544, %v504
    %v552 = vsel %vm548, %v545, %v506
    %v553 = vsel %vm548, %v546, %v508
    %v554 = vsel %vm548, %v547, %v510
    %vm555 = vcmask 97280
    %v556 = vsel %vm555, %v549, %v524
    %v557 = vsel %vm555, %v550, %v526
    %v558 = vsel %vm555, %v551, %v528
    %v559 = vsel %vm555, %v552, %v530
    %v560 = vsel %vm555, %v553, %v532
    %v561 = vsel %vm555, %v554, %v534
    %v562 = vld [vmem:[%s2] sm:$0x1]
    %v564 = vperm.slane %v562, 0
    %v566 = vadd.f32 %v556, %v564
    %v567 = vadd.f32 %v557, %v564
    %v568 = vadd.f32 %v558, %v564
    %v569 = vadd.f32 %v559, %v564
    %v570 = vadd.f32 %v560, %v564
    %v571 = vadd.f32 %v561, %v564
    %vm572 = vcmp.gt.f32.partialorder %v566, 0.0
    %vm573 = vcmp.gt.f32.partialorder %v567, 0.0
    %vm574 = vcmp.gt.f32.partialorder %v568, 0.0
    %vm575 = vcmp.gt.f32.partialorder %v569, 0.0
    %vm576 = vcmp.gt.f32.partialorder %v570, 0.0
    %vm577 = vcmp.gt.f32.partialorder %v571, 0.0
    %v578 = vmul.f32 %v566, 0.1
    %v579 = vmul.f32 %v567, 0.1
    %v580 = vmul.f32 %v568, 0.1
    %v581 = vmul.f32 %v569, 0.1
    %v582 = vmul.f32 %v570, 0.1
    %v583 = vmul.f32 %v571, 0.1
    %v584 = vsel %vm572, %v566, %v578
    %v585 = vsel %vm573, %v567, %v579
    %v586 = vsel %vm574, %v568, %v580
    %v587 = vsel %vm575, %v569, %v581
    %v588 = vsel %vm576, %v570, %v582
    %v589 = vsel %vm577, %v571, %v583
    %vm590 = vcmask 130048
    %591 = vst.msk [vmem:[#allocation2] sm:$0xff] %vm590, %v584
    %592 = vst.msk [vmem:[#allocation2 + $0x8] sm:$0xff] %vm590, %v585
    %593 = vst.msk [vmem:[#allocation2 + $0x10] sm:$0xff] %vm590, %v586
    %594 = vst.msk [vmem:[#allocation2 + $0x18] sm:$0xff] %vm590, %v587
    %595 = vst.msk [vmem:[#allocation2 + $0x20] sm:$0xff] %vm590, %v588
    %596 = vst.msk [vmem:[#allocation2 + $0x28] sm:$0xff] %vm590, %v589
    // Predicated region
    $region14: #{conv1d_forward.1} parent=1 // pred_check
      _
    $region15: #{conv1d_forward.1} parent=1 // pred_check_branch
      %598 = sbr.rel (0) target = $region17
    $region16: #{conv1d_forward.1} parent=1 // pred_region
      %600 = vsyncadd [#allocation3], 0
      %s601 = sshll.u32 [#allocation2], 4
      %s602 = int_to_ptr.vmem [resolvable:$true] %s601
      %s603 = sshll.u32 %s3, 4
      %s604 = int_to_ptr.hbm [resolvable:$true] %s603
      %609 = dma.vmem_to_hbm [thread:$0]  %s602, 768, %s604, [#allocation3], 128, 128, 8
    $region17: #{conv1d_forward.1} parent=1 // pred_fallthru
      _
    // Predicated region
    $region18: #{conv1d_forward.1} parent=1 // pred_check
      _
    $region19: #{conv1d_forward.1} parent=1 // pred_check_branch
      %611 = sbr.rel (0) target = $region21
    $region20: #{conv1d_forward.1} parent=1 // pred_region
      %613 = dma.done [#allocation3], 768
    $region21: #{conv1d_forward.1} parent=1 // pred_fallthru
      _
    %614 = vsyncpa [#allocation3], 1

</llo_original>
